<compile_context>
chip_gen: v7x
topology: tpu7x:2x2x1
jax: 0.10.0
libtpu: 0.0.40
codegen_flags: <defaults>
</compile_context>

<pallas_src>
import jax
import jax.numpy as jnp
from jax.experimental import pallas as pl
from jax.experimental.pallas import tpu as pltpu

LANE = 128
CH = 8                       # sublane chunk height -> one full (8,128) vreg per feature
CHUNK_ROWS = CH * LANE       # 1024 batch rows per chunk
MAX_TILE_CHUNKS = 32         # 32 chunks = 32768 rows = 512 KiB x-tile (f32) per grid step


def mlp_kernel(x_ref, w1_ref, b1_ref, w2_ref, b2_ref, w3_ref, b3_ref, o_ref):
    # x_ref / o_ref: (4, TBc, 128) VMEM tiles — feature on axis 0, batch packed on
    # (sublane, lane) axes.  w*_ref: (out, in) f32 SMEM; b*_ref: (out,) f32 SMEM.

    # Hoist all SMEM scalar reads once per kernel invocation (outside the chunk loop).
    W1 = [[w1_ref[o, i] for i in range(4)] for o in range(5)]
    B1 = [b1_ref[o] for o in range(5)]
    W2 = [[w2_ref[o, i] for i in range(5)] for o in range(4)]
    B2 = [b2_ref[o] for o in range(4)]
    W3 = [[w3_ref[o, i] for i in range(4)] for o in range(4)]
    B3 = [b3_ref[o] for o in range(4)]

    def sigmoid(z):
        # exp on EUP; approx reciprocal on EUP; one Newton step (VPU) restores ~f32
        # precision so the 1e-5 self-check still passes.  Clamp keeps exp finite.
        z = jnp.maximum(z, -30.0)
        e = jnp.exp(-z)
        d = 1.0 + e
        r = pl.reciprocal(d, approx=True)
        return r * (2.0 - d * r)

    def linear(rows, W, Bv, act):
        out = []
        for o in range(len(W)):
            acc = rows[0] * W[o][0] + Bv[o]          # scalar-broadcast FMA on the VPU
            for i in range(1, len(W[o])):
                acc = acc + rows[i] * W[o][i]
            out.append(sigmoid(acc) if act else acc)
        return out

    n_chunks = x_ref.shape[1] // CH

    def body(c, carry):
        s = pl.multiple_of(c * CH, CH)
        xs = [x_ref[f, pl.ds(s, CH), :] for f in range(4)]   # 4 x (CH, 128) — full vregs
        h1 = linear(xs, W1, B1, True)    # Linear(4->5) + Sigmoid
        h2 = linear(h1, W2, B2, True)    # Linear(5->4) + Sigmoid
        y = linear(h2, W3, B3, False)    # Linear(4->4)
        for o in range(4):
            o_ref[o, pl.ds(s, CH), :] = y[o]                  # lane-dense full-width stores
        return carry

    jax.lax.fori_loop(0, n_chunks, body, 0, unroll=True)


def net_4541_forward(x, params):
    """x: (B, 4) f32.  params: PyTorch-style (out, in) weights and (out,) biases."""
    w1, b1, w2, b2, w3, b3 = params
    B, F = x.shape
    assert F == 4

    # Batch tiling: chunks of 1024 rows; tiles of up to MAX_TILE_CHUNKS chunks.
    total_chunks = -(-B // CHUNK_ROWS)
    if total_chunks >= 2:
        # Guarantee >= 2 grid steps so v7x's 2 TensorCores both get work.
        tile_chunks = min(MAX_TILE_CHUNKS, -(-total_chunks // 2))
    else:
        tile_chunks = 1
    grid_steps = -(-total_chunks // tile_chunks)
    B_pad = grid_steps * tile_chunks * CHUNK_ROWS
    TBc = tile_chunks * CH

    x_p = x if B_pad == B else jnp.pad(x, ((0, B_pad - B), (0, 0)))
    # Layout plumbing: (B_pad, 4) -> (4, B_pad//128, 128) so batch fills sublanes+lanes.
    xt = x_p.T.reshape(4, B_pad // LANE, LANE)

    smem_spec = pl.BlockSpec(memory_space=pltpu.MemorySpace.SMEM)

    cost = pl.CostEstimate(
        flops=int(B_pad) * (2 * 4 * 5 + 2 * 5 * 4 + 2 * 4 * 4),  # ~112 FLOPs/row
        transcendentals=int(B_pad) * 9,                          # 5 + 4 sigmoids/row
        bytes_accessed=int(B_pad) * 4 * 4 * 2,                   # x in + y out (f32)
    )

    out_t = pl.pallas_call(
        mlp_kernel,
        out_shape=jax.ShapeDtypeStruct((4, B_pad // LANE, LANE), jnp.float32),
        grid=(grid_steps,),
        in_specs=[
            pl.BlockSpec((4, TBc, LANE), lambda i: (0, i, 0)),   # x tile
            smem_spec, smem_spec,                                # w1, b1 (loop-invariant)
            smem_spec, smem_spec,                                # w2, b2
            smem_spec, smem_spec,                                # w3, b3
        ],
        out_specs=pl.BlockSpec((4, TBc, LANE), lambda i: (0, i, 0)),
        compiler_params=pltpu.CompilerParams(
            dimension_semantics=("parallel",),                   # shard batch tiles across TCs
        ),
        cost_estimate=cost,
    )(xt, w1, b1, w2, b2, w3, b3)

    return out_t.reshape(4, B_pad).T[:B]  # back to (B, 4)


def init_params(key):
    """PyTorch nn.Linear default init (U[-1/sqrt(fan_in), 1/sqrt(fan_in)]).
    Weights stored PyTorch-style as (out_features, in_features); biases as (out_features,)."""
    def linear(key, fan_in, fan_out):
        kw, kb = jax.random.split(key)
        bound = 1.0 / jnp.sqrt(fan_in)
        w = jax.random.uniform(kw, (fan_out, fan_in), jnp.float32, -bound, bound)
        b = jax.random.uniform(kb, (fan_out,), jnp.float32, -bound, bound)
        return w, b

    k1, k2, k3 = jax.random.split(key, 3)
    w1, b1 = linear(k1, 4, 5)
    w2, b2 = linear(k2, 5, 4)
    w3, b3 = linear(k3, 4, 4)
    return (w1, b1, w2, b2, w3, b3)


def reference_forward(x, params):
    w1, b1, w2, b2, w3, b3 = params
    h = jax.nn.sigmoid(x @ w1.T + b1)
    h = jax.nn.sigmoid(h @ w2.T + b2)
    return h @ w3.T + b3


if __name__ == "__main__":
    key = jax.random.PRNGKey(0)
    k_params, k_x = jax.random.split(key)

    params = init_params(k_params)
    x = jax.random.normal(k_x, (8, 4), dtype=jnp.float32)  # batch=8, features=4

    out = net_4541_forward(x, params)
    out = jax.block_until_ready(out)

    ref = reference_forward(x, params)
    assert out.shape == (8, 4)
    assert jnp.allclose(out, ref, atol=1e-5, rtol=1e-5), "mismatch vs pure-JAX reference"

    print("KERNEL_OK")
</pallas_src>

<mosaic_0001>
module attributes {stable_mosaic.version = 11 : i64} {
  func.func @mlp_kernel(%arg0: i32, %arg1: memref<4x8x128xf32, #tpu.memory_space<vmem>>, %arg2: memref<5x4xf32, #tpu.memory_space<smem>>, %arg3: memref<5xf32, #tpu.memory_space<smem>>, %arg4: memref<4x5xf32, #tpu.memory_space<smem>>, %arg5: memref<4xf32, #tpu.memory_space<smem>>, %arg6: memref<4x4xf32, #tpu.memory_space<smem>>, %arg7: memref<4xf32, #tpu.memory_space<smem>>, %arg8: memref<4x8x128xf32, #tpu.memory_space<vmem>>) attributes {dimension_semantics = [#tpu.dimension_semantics<parallel>], iteration_bounds = array<i64: 1>, scalar_prefetch = 0 : i64, scratch_operands = 0 : i64, tpu.core_type = #tpu.core_type<tc>, window_params = [{transform_indices = @transform_0, window_bounds = array<i64: 4, 8, 128>}, {transform_indices = @transform_1, window_bounds = array<i64: 5, 4>}, {transform_indices = @transform_2, window_bounds = array<i64: 5>}, {transform_indices = @transform_3, window_bounds = array<i64: 4, 5>}, {transform_indices = @transform_4, window_bounds = array<i64: 4>}, {transform_indices = @transform_5, window_bounds = array<i64: 4, 4>}, {transform_indices = @transform_6, window_bounds = array<i64: 4>}, {transform_indices = @transform_7, window_bounds = array<i64: 4, 8, 128>}]} {
    %c0 = arith.constant 0 : index
    %c0_0 = arith.constant 0 : index
    %0 = memref.load %arg2[%c0, %c0_0] : memref<5x4xf32, #tpu.memory_space<smem>>
    %c0_1 = arith.constant 0 : index
    %c1 = arith.constant 1 : index
    %1 = memref.load %arg2[%c0_1, %c1] : memref<5x4xf32, #tpu.memory_space<smem>>
    %c0_2 = arith.constant 0 : index
    %c2 = arith.constant 2 : index
    %2 = memref.load %arg2[%c0_2, %c2] : memref<5x4xf32, #tpu.memory_space<smem>>
    %c0_3 = arith.constant 0 : index
    %c3 = arith.constant 3 : index
    %3 = memref.load %arg2[%c0_3, %c3] : memref<5x4xf32, #tpu.memory_space<smem>>
    %c1_4 = arith.constant 1 : index
    %c0_5 = arith.constant 0 : index
    %4 = memref.load %arg2[%c1_4, %c0_5] : memref<5x4xf32, #tpu.memory_space<smem>>
    %c1_6 = arith.constant 1 : index
    %c1_7 = arith.constant 1 : index
    %5 = memref.load %arg2[%c1_6, %c1_7] : memref<5x4xf32, #tpu.memory_space<smem>>
    %c1_8 = arith.constant 1 : index
    %c2_9 = arith.constant 2 : index
    %6 = memref.load %arg2[%c1_8, %c2_9] : memref<5x4xf32, #tpu.memory_space<smem>>
    %c1_10 = arith.constant 1 : index
    %c3_11 = arith.constant 3 : index
    %7 = memref.load %arg2[%c1_10, %c3_11] : memref<5x4xf32, #tpu.memory_space<smem>>
    %c2_12 = arith.constant 2 : index
    %c0_13 = arith.constant 0 : index
    %8 = memref.load %arg2[%c2_12, %c0_13] : memref<5x4xf32, #tpu.memory_space<smem>>
    %c2_14 = arith.constant 2 : index
    %c1_15 = arith.constant 1 : index
    %9 = memref.load %arg2[%c2_14, %c1_15] : memref<5x4xf32, #tpu.memory_space<smem>>
    %c2_16 = arith.constant 2 : index
    %c2_17 = arith.constant 2 : index
    %10 = memref.load %arg2[%c2_16, %c2_17] : memref<5x4xf32, #tpu.memory_space<smem>>
    %c2_18 = arith.constant 2 : index
    %c3_19 = arith.constant 3 : index
    %11 = memref.load %arg2[%c2_18, %c3_19] : memref<5x4xf32, #tpu.memory_space<smem>>
    %c3_20 = arith.constant 3 : index
    %c0_21 = arith.constant 0 : index
    %12 = memref.load %arg2[%c3_20, %c0_21] : memref<5x4xf32, #tpu.memory_space<smem>>
    %c3_22 = arith.constant 3 : index
    %c1_23 = arith.constant 1 : index
    %13 = memref.load %arg2[%c3_22, %c1_23] : memref<5x4xf32, #tpu.memory_space<smem>>
    %c3_24 = arith.constant 3 : index
    %c2_25 = arith.constant 2 : index
    %14 = memref.load %arg2[%c3_24, %c2_25] : memref<5x4xf32, #tpu.memory_space<smem>>
    %c3_26 = arith.constant 3 : index
    %c3_27 = arith.constant 3 : index
    %15 = memref.load %arg2[%c3_26, %c3_27] : memref<5x4xf32, #tpu.memory_space<smem>>
    %c4 = arith.constant 4 : index
    %c0_28 = arith.constant 0 : index
    %16 = memref.load %arg2[%c4, %c0_28] : memref<5x4xf32, #tpu.memory_space<smem>>
    %c4_29 = arith.constant 4 : index
    %c1_30 = arith.constant 1 : index
    %17 = memref.load %arg2[%c4_29, %c1_30] : memref<5x4xf32, #tpu.memory_space<smem>>
    %c4_31 = arith.constant 4 : index
    %c2_32 = arith.constant 2 : index
    %18 = memref.load %arg2[%c4_31, %c2_32] : memref<5x4xf32, #tpu.memory_space<smem>>
    %c4_33 = arith.constant 4 : index
    %c3_34 = arith.constant 3 : index
    %19 = memref.load %arg2[%c4_33, %c3_34] : memref<5x4xf32, #tpu.memory_space<smem>>
    %c0_35 = arith.constant 0 : index
    %20 = memref.load %arg3[%c0_35] : memref<5xf32, #tpu.memory_space<smem>>
    %c1_36 = arith.constant 1 : index
    %21 = memref.load %arg3[%c1_36] : memref<5xf32, #tpu.memory_space<smem>>
    %c2_37 = arith.constant 2 : index
    %22 = memref.load %arg3[%c2_37] : memref<5xf32, #tpu.memory_space<smem>>
    %c3_38 = arith.constant 3 : index
    %23 = memref.load %arg3[%c3_38] : memref<5xf32, #tpu.memory_space<smem>>
    %c4_39 = arith.constant 4 : index
    %24 = memref.load %arg3[%c4_39] : memref<5xf32, #tpu.memory_space<smem>>
    %c0_40 = arith.constant 0 : index
    %c0_41 = arith.constant 0 : index
    %25 = memref.load %arg4[%c0_40, %c0_41] : memref<4x5xf32, #tpu.memory_space<smem>>
    %c0_42 = arith.constant 0 : index
    %c1_43 = arith.constant 1 : index
    %26 = memref.load %arg4[%c0_42, %c1_43] : memref<4x5xf32, #tpu.memory_space<smem>>
    %c0_44 = arith.constant 0 : index
    %c2_45 = arith.constant 2 : index
    %27 = memref.load %arg4[%c0_44, %c2_45] : memref<4x5xf32, #tpu.memory_space<smem>>
    %c0_46 = arith.constant 0 : index
    %c3_47 = arith.constant 3 : index
    %28 = memref.load %arg4[%c0_46, %c3_47] : memref<4x5xf32, #tpu.memory_space<smem>>
    %c0_48 = arith.constant 0 : index
    %c4_49 = arith.constant 4 : index
    %29 = memref.load %arg4[%c0_48, %c4_49] : memref<4x5xf32, #tpu.memory_space<smem>>
    %c1_50 = arith.constant 1 : index
    %c0_51 = arith.constant 0 : index
    %30 = memref.load %arg4[%c1_50, %c0_51] : memref<4x5xf32, #tpu.memory_space<smem>>
    %c1_52 = arith.constant 1 : index
    %c1_53 = arith.constant 1 : index
    %31 = memref.load %arg4[%c1_52, %c1_53] : memref<4x5xf32, #tpu.memory_space<smem>>
    %c1_54 = arith.constant 1 : index
    %c2_55 = arith.constant 2 : index
    %32 = memref.load %arg4[%c1_54, %c2_55] : memref<4x5xf32, #tpu.memory_space<smem>>
    %c1_56 = arith.constant 1 : index
    %c3_57 = arith.constant 3 : index
    %33 = memref.load %arg4[%c1_56, %c3_57] : memref<4x5xf32, #tpu.memory_space<smem>>
    %c1_58 = arith.constant 1 : index
    %c4_59 = arith.constant 4 : index
    %34 = memref.load %arg4[%c1_58, %c4_59] : memref<4x5xf32, #tpu.memory_space<smem>>
    %c2_60 = arith.constant 2 : index
    %c0_61 = arith.constant 0 : index
    %35 = memref.load %arg4[%c2_60, %c0_61] : memref<4x5xf32, #tpu.memory_space<smem>>
    %c2_62 = arith.constant 2 : index
    %c1_63 = arith.constant 1 : index
    %36 = memref.load %arg4[%c2_62, %c1_63] : memref<4x5xf32, #tpu.memory_space<smem>>
    %c2_64 = arith.constant 2 : index
    %c2_65 = arith.constant 2 : index
    %37 = memref.load %arg4[%c2_64, %c2_65] : memref<4x5xf32, #tpu.memory_space<smem>>
    %c2_66 = arith.constant 2 : index
    %c3_67 = arith.constant 3 : index
    %38 = memref.load %arg4[%c2_66, %c3_67] : memref<4x5xf32, #tpu.memory_space<smem>>
    %c2_68 = arith.constant 2 : index
    %c4_69 = arith.constant 4 : index
    %39 = memref.load %arg4[%c2_68, %c4_69] : memref<4x5xf32, #tpu.memory_space<smem>>
    %c3_70 = arith.constant 3 : index
    %c0_71 = arith.constant 0 : index
    %40 = memref.load %arg4[%c3_70, %c0_71] : memref<4x5xf32, #tpu.memory_space<smem>>
    %c3_72 = arith.constant 3 : index
    %c1_73 = arith.constant 1 : index
    %41 = memref.load %arg4[%c3_72, %c1_73] : memref<4x5xf32, #tpu.memory_space<smem>>
    %c3_74 = arith.constant 3 : index
    %c2_75 = arith.constant 2 : index
    %42 = memref.load %arg4[%c3_74, %c2_75] : memref<4x5xf32, #tpu.memory_space<smem>>
    %c3_76 = arith.constant 3 : index
    %c3_77 = arith.constant 3 : index
    %43 = memref.load %arg4[%c3_76, %c3_77] : memref<4x5xf32, #tpu.memory_space<smem>>
    %c3_78 = arith.constant 3 : index
    %c4_79 = arith.constant 4 : index
    %44 = memref.load %arg4[%c3_78, %c4_79] : memref<4x5xf32, #tpu.memory_space<smem>>
    %c0_80 = arith.constant 0 : index
    %45 = memref.load %arg5[%c0_80] : memref<4xf32, #tpu.memory_space<smem>>
    %c1_81 = arith.constant 1 : index
    %46 = memref.load %arg5[%c1_81] : memref<4xf32, #tpu.memory_space<smem>>
    %c2_82 = arith.constant 2 : index
    %47 = memref.load %arg5[%c2_82] : memref<4xf32, #tpu.memory_space<smem>>
    %c3_83 = arith.constant 3 : index
    %48 = memref.load %arg5[%c3_83] : memref<4xf32, #tpu.memory_space<smem>>
    %c0_84 = arith.constant 0 : index
    %c0_85 = arith.constant 0 : index
    %49 = memref.load %arg6[%c0_84, %c0_85] : memref<4x4xf32, #tpu.memory_space<smem>>
    %c0_86 = arith.constant 0 : index
    %c1_87 = arith.constant 1 : index
    %50 = memref.load %arg6[%c0_86, %c1_87] : memref<4x4xf32, #tpu.memory_space<smem>>
    %c0_88 = arith.constant 0 : index
    %c2_89 = arith.constant 2 : index
    %51 = memref.load %arg6[%c0_88, %c2_89] : memref<4x4xf32, #tpu.memory_space<smem>>
    %c0_90 = arith.constant 0 : index
    %c3_91 = arith.constant 3 : index
    %52 = memref.load %arg6[%c0_90, %c3_91] : memref<4x4xf32, #tpu.memory_space<smem>>
    %c1_92 = arith.constant 1 : index
    %c0_93 = arith.constant 0 : index
    %53 = memref.load %arg6[%c1_92, %c0_93] : memref<4x4xf32, #tpu.memory_space<smem>>
    %c1_94 = arith.constant 1 : index
    %c1_95 = arith.constant 1 : index
    %54 = memref.load %arg6[%c1_94, %c1_95] : memref<4x4xf32, #tpu.memory_space<smem>>
    %c1_96 = arith.constant 1 : index
    %c2_97 = arith.constant 2 : index
    %55 = memref.load %arg6[%c1_96, %c2_97] : memref<4x4xf32, #tpu.memory_space<smem>>
    %c1_98 = arith.constant 1 : index
    %c3_99 = arith.constant 3 : index
    %56 = memref.load %arg6[%c1_98, %c3_99] : memref<4x4xf32, #tpu.memory_space<smem>>
    %c2_100 = arith.constant 2 : index
    %c0_101 = arith.constant 0 : index
    %57 = memref.load %arg6[%c2_100, %c0_101] : memref<4x4xf32, #tpu.memory_space<smem>>
    %c2_102 = arith.constant 2 : index
    %c1_103 = arith.constant 1 : index
    %58 = memref.load %arg6[%c2_102, %c1_103] : memref<4x4xf32, #tpu.memory_space<smem>>
    %c2_104 = arith.constant 2 : index
    %c2_105 = arith.constant 2 : index
    %59 = memref.load %arg6[%c2_104, %c2_105] : memref<4x4xf32, #tpu.memory_space<smem>>
    %c2_106 = arith.constant 2 : index
    %c3_107 = arith.constant 3 : index
    %60 = memref.load %arg6[%c2_106, %c3_107] : memref<4x4xf32, #tpu.memory_space<smem>>
    %c3_108 = arith.constant 3 : index
    %c0_109 = arith.constant 0 : index
    %61 = memref.load %arg6[%c3_108, %c0_109] : memref<4x4xf32, #tpu.memory_space<smem>>
    %c3_110 = arith.constant 3 : index
    %c1_111 = arith.constant 1 : index
    %62 = memref.load %arg6[%c3_110, %c1_111] : memref<4x4xf32, #tpu.memory_space<smem>>
    %c3_112 = arith.constant 3 : index
    %c2_113 = arith.constant 2 : index
    %63 = memref.load %arg6[%c3_112, %c2_113] : memref<4x4xf32, #tpu.memory_space<smem>>
    %c3_114 = arith.constant 3 : index
    %c3_115 = arith.constant 3 : index
    %64 = memref.load %arg6[%c3_114, %c3_115] : memref<4x4xf32, #tpu.memory_space<smem>>
    %c0_116 = arith.constant 0 : index
    %65 = memref.load %arg7[%c0_116] : memref<4xf32, #tpu.memory_space<smem>>
    %c1_117 = arith.constant 1 : index
    %66 = memref.load %arg7[%c1_117] : memref<4xf32, #tpu.memory_space<smem>>
    %c2_118 = arith.constant 2 : index
    %67 = memref.load %arg7[%c2_118] : memref<4xf32, #tpu.memory_space<smem>>
    %c3_119 = arith.constant 3 : index
    %68 = memref.load %arg7[%c3_119] : memref<4xf32, #tpu.memory_space<smem>>
    %c0_i32 = arith.constant 0 : i32
    %c8_i32 = arith.constant 8 : i32
    %69 = arith.muli %c0_i32, %c8_i32 : i32
    %70 = tpu.assume_multiple %69, 8 : i32
    %c0_120 = arith.constant 0 : index
    %71 = arith.index_cast %70 : i32 to index
    %c0_121 = arith.constant 0 : index
    %72 = vector.load %arg1[%c0_120, %71, %c0_121] : memref<4x8x128xf32, #tpu.memory_space<vmem>>, vector<1x8x128xf32>
    %73 = vector.shape_cast %72 : vector<1x8x128xf32> to vector<8x128xf32>
    %c1_122 = arith.constant 1 : index
    %74 = arith.index_cast %70 : i32 to index
    %c0_123 = arith.constant 0 : index
    %75 = vector.load %arg1[%c1_122, %74, %c0_123] : memref<4x8x128xf32, #tpu.memory_space<vmem>>, vector<1x8x128xf32>
    %76 = vector.shape_cast %75 : vector<1x8x128xf32> to vector<8x128xf32>
    %c2_124 = arith.constant 2 : index
    %77 = arith.index_cast %70 : i32 to index
    %c0_125 = arith.constant 0 : index
    %78 = vector.load %arg1[%c2_124, %77, %c0_125] : memref<4x8x128xf32, #tpu.memory_space<vmem>>, vector<1x8x128xf32>
    %79 = vector.shape_cast %78 : vector<1x8x128xf32> to vector<8x128xf32>
    %c3_126 = arith.constant 3 : index
    %80 = arith.index_cast %70 : i32 to index
    %c0_127 = arith.constant 0 : index
    %81 = vector.load %arg1[%c3_126, %80, %c0_127] : memref<4x8x128xf32, #tpu.memory_space<vmem>>, vector<1x8x128xf32>
    %82 = vector.shape_cast %81 : vector<1x8x128xf32> to vector<8x128xf32>
    %83 = vector.broadcast %0 : f32 to vector<8x128xf32>
    %84 = arith.mulf %73, %83 : vector<8x128xf32>
    %85 = vector.broadcast %20 : f32 to vector<8x128xf32>
    %86 = arith.addf %84, %85 : vector<8x128xf32>
    %87 = vector.broadcast %1 : f32 to vector<8x128xf32>
    %88 = arith.mulf %76, %87 : vector<8x128xf32>
    %89 = arith.addf %86, %88 : vector<8x128xf32>
    %90 = vector.broadcast %2 : f32 to vector<8x128xf32>
    %91 = arith.mulf %79, %90 : vector<8x128xf32>
    %92 = arith.addf %89, %91 : vector<8x128xf32>
    %93 = vector.broadcast %3 : f32 to vector<8x128xf32>
    %94 = arith.mulf %82, %93 : vector<8x128xf32>
    %95 = arith.addf %92, %94 : vector<8x128xf32>
    %cst = arith.constant -3.000000e+01 : f32
    %96 = vector.broadcast %cst : f32 to vector<8x128xf32>
    %97 = arith.maximumf %95, %96 : vector<8x128xf32>
    %cst_128 = arith.constant 0.000000e+00 : f32
    %98 = vector.broadcast %cst_128 : f32 to vector<8x128xf32>
    %99 = arith.subf %98, %97 : vector<8x128xf32>
    %100 = math.exp %99 : vector<8x128xf32>
    %cst_129 = arith.constant 1.000000e+00 : f32
    %101 = vector.broadcast %cst_129 : f32 to vector<8x128xf32>
    %102 = arith.addf %101, %100 : vector<8x128xf32>
    %103 = tpu.reciprocal %102 {approx = true} : vector<8x128xf32> -> vector<8x128xf32>
    %104 = arith.mulf %102, %103 : vector<8x128xf32>
    %cst_130 = arith.constant 2.000000e+00 : f32
    %105 = vector.broadcast %cst_130 : f32 to vector<8x128xf32>
    %106 = arith.subf %105, %104 : vector<8x128xf32>
    %107 = arith.mulf %103, %106 : vector<8x128xf32>
    %108 = vector.broadcast %4 : f32 to vector<8x128xf32>
    %109 = arith.mulf %73, %108 : vector<8x128xf32>
    %110 = vector.broadcast %21 : f32 to vector<8x128xf32>
    %111 = arith.addf %109, %110 : vector<8x128xf32>
    %112 = vector.broadcast %5 : f32 to vector<8x128xf32>
    %113 = arith.mulf %76, %112 : vector<8x128xf32>
    %114 = arith.addf %111, %113 : vector<8x128xf32>
    %115 = vector.broadcast %6 : f32 to vector<8x128xf32>
    %116 = arith.mulf %79, %115 : vector<8x128xf32>
    %117 = arith.addf %114, %116 : vector<8x128xf32>
    %118 = vector.broadcast %7 : f32 to vector<8x128xf32>
    %119 = arith.mulf %82, %118 : vector<8x128xf32>
    %120 = arith.addf %117, %119 : vector<8x128xf32>
    %cst_131 = arith.constant -3.000000e+01 : f32
    %121 = vector.broadcast %cst_131 : f32 to vector<8x128xf32>
    %122 = arith.maximumf %120, %121 : vector<8x128xf32>
    %cst_132 = arith.constant 0.000000e+00 : f32
    %123 = vector.broadcast %cst_132 : f32 to vector<8x128xf32>
    %124 = arith.subf %123, %122 : vector<8x128xf32>
    %125 = math.exp %124 : vector<8x128xf32>
    %cst_133 = arith.constant 1.000000e+00 : f32
    %126 = vector.broadcast %cst_133 : f32 to vector<8x128xf32>
    %127 = arith.addf %126, %125 : vector<8x128xf32>
    %128 = tpu.reciprocal %127 {approx = true} : vector<8x128xf32> -> vector<8x128xf32>
    %129 = arith.mulf %127, %128 : vector<8x128xf32>
    %cst_134 = arith.constant 2.000000e+00 : f32
    %130 = vector.broadcast %cst_134 : f32 to vector<8x128xf32>
    %131 = arith.subf %130, %129 : vector<8x128xf32>
    %132 = arith.mulf %128, %131 : vector<8x128xf32>
    %133 = vector.broadcast %8 : f32 to vector<8x128xf32>
    %134 = arith.mulf %73, %133 : vector<8x128xf32>
    %135 = vector.broadcast %22 : f32 to vector<8x128xf32>
    %136 = arith.addf %134, %135 : vector<8x128xf32>
    %137 = vector.broadcast %9 : f32 to vector<8x128xf32>
    %138 = arith.mulf %76, %137 : vector<8x128xf32>
    %139 = arith.addf %136, %138 : vector<8x128xf32>
    %140 = vector.broadcast %10 : f32 to vector<8x128xf32>
    %141 = arith.mulf %79, %140 : vector<8x128xf32>
    %142 = arith.addf %139, %141 : vector<8x128xf32>
    %143 = vector.broadcast %11 : f32 to vector<8x128xf32>
    %144 = arith.mulf %82, %143 : vector<8x128xf32>
    %145 = arith.addf %142, %144 : vector<8x128xf32>
    %cst_135 = arith.constant -3.000000e+01 : f32
    %146 = vector.broadcast %cst_135 : f32 to vector<8x128xf32>
    %147 = arith.maximumf %145, %146 : vector<8x128xf32>
    %cst_136 = arith.constant 0.000000e+00 : f32
    %148 = vector.broadcast %cst_136 : f32 to vector<8x128xf32>
    %149 = arith.subf %148, %147 : vector<8x128xf32>
    %150 = math.exp %149 : vector<8x128xf32>
    %cst_137 = arith.constant 1.000000e+00 : f32
    %151 = vector.broadcast %cst_137 : f32 to vector<8x128xf32>
    %152 = arith.addf %151, %150 : vector<8x128xf32>
    %153 = tpu.reciprocal %152 {approx = true} : vector<8x128xf32> -> vector<8x128xf32>
    %154 = arith.mulf %152, %153 : vector<8x128xf32>
    %cst_138 = arith.constant 2.000000e+00 : f32
    %155 = vector.broadcast %cst_138 : f32 to vector<8x128xf32>
    %156 = arith.subf %155, %154 : vector<8x128xf32>
    %157 = arith.mulf %153, %156 : vector<8x128xf32>
    %158 = vector.broadcast %12 : f32 to vector<8x128xf32>
    %159 = arith.mulf %73, %158 : vector<8x128xf32>
    %160 = vector.broadcast %23 : f32 to vector<8x128xf32>
    %161 = arith.addf %159, %160 : vector<8x128xf32>
    %162 = vector.broadcast %13 : f32 to vector<8x128xf32>
    %163 = arith.mulf %76, %162 : vector<8x128xf32>
    %164 = arith.addf %161, %163 : vector<8x128xf32>
    %165 = vector.broadcast %14 : f32 to vector<8x128xf32>
    %166 = arith.mulf %79, %165 : vector<8x128xf32>
    %167 = arith.addf %164, %166 : vector<8x128xf32>
    %168 = vector.broadcast %15 : f32 to vector<8x128xf32>
    %169 = arith.mulf %82, %168 : vector<8x128xf32>
    %170 = arith.addf %167, %169 : vector<8x128xf32>
    %cst_139 = arith.constant -3.000000e+01 : f32
    %171 = vector.broadcast %cst_139 : f32 to vector<8x128xf32>
    %172 = arith.maximumf %170, %171 : vector<8x128xf32>
    %cst_140 = arith.constant 0.000000e+00 : f32
    %173 = vector.broadcast %cst_140 : f32 to vector<8x128xf32>
    %174 = arith.subf %173, %172 : vector<8x128xf32>
    %175 = math.exp %174 : vector<8x128xf32>
    %cst_141 = arith.constant 1.000000e+00 : f32
    %176 = vector.broadcast %cst_141 : f32 to vector<8x128xf32>
    %177 = arith.addf %176, %175 : vector<8x128xf32>
    %178 = tpu.reciprocal %177 {approx = true} : vector<8x128xf32> -> vector<8x128xf32>
    %179 = arith.mulf %177, %178 : vector<8x128xf32>
    %cst_142 = arith.constant 2.000000e+00 : f32
    %180 = vector.broadcast %cst_142 : f32 to vector<8x128xf32>
    %181 = arith.subf %180, %179 : vector<8x128xf32>
    %182 = arith.mulf %178, %181 : vector<8x128xf32>
    %183 = vector.broadcast %16 : f32 to vector<8x128xf32>
    %184 = arith.mulf %73, %183 : vector<8x128xf32>
    %185 = vector.broadcast %24 : f32 to vector<8x128xf32>
    %186 = arith.addf %184, %185 : vector<8x128xf32>
    %187 = vector.broadcast %17 : f32 to vector<8x128xf32>
    %188 = arith.mulf %76, %187 : vector<8x128xf32>
    %189 = arith.addf %186, %188 : vector<8x128xf32>
    %190 = vector.broadcast %18 : f32 to vector<8x128xf32>
    %191 = arith.mulf %79, %190 : vector<8x128xf32>
    %192 = arith.addf %189, %191 : vector<8x128xf32>
    %193 = vector.broadcast %19 : f32 to vector<8x128xf32>
    %194 = arith.mulf %82, %193 : vector<8x128xf32>
    %195 = arith.addf %192, %194 : vector<8x128xf32>
    %cst_143 = arith.constant -3.000000e+01 : f32
    %196 = vector.broadcast %cst_143 : f32 to vector<8x128xf32>
    %197 = arith.maximumf %195, %196 : vector<8x128xf32>
    %cst_144 = arith.constant 0.000000e+00 : f32
    %198 = vector.broadcast %cst_144 : f32 to vector<8x128xf32>
    %199 = arith.subf %198, %197 : vector<8x128xf32>
    %200 = math.exp %199 : vector<8x128xf32>
    %cst_145 = arith.constant 1.000000e+00 : f32
    %201 = vector.broadcast %cst_145 : f32 to vector<8x128xf32>
    %202 = arith.addf %201, %200 : vector<8x128xf32>
    %203 = tpu.reciprocal %202 {approx = true} : vector<8x128xf32> -> vector<8x128xf32>
    %204 = arith.mulf %202, %203 : vector<8x128xf32>
    %cst_146 = arith.constant 2.000000e+00 : f32
    %205 = vector.broadcast %cst_146 : f32 to vector<8x128xf32>
    %206 = arith.subf %205, %204 : vector<8x128xf32>
    %207 = arith.mulf %203, %206 : vector<8x128xf32>
    %208 = vector.broadcast %25 : f32 to vector<8x128xf32>
    %209 = arith.mulf %107, %208 : vector<8x128xf32>
    %210 = vector.broadcast %45 : f32 to vector<8x128xf32>
    %211 = arith.addf %209, %210 : vector<8x128xf32>
    %212 = vector.broadcast %26 : f32 to vector<8x128xf32>
    %213 = arith.mulf %132, %212 : vector<8x128xf32>
    %214 = arith.addf %211, %213 : vector<8x128xf32>
    %215 = vector.broadcast %27 : f32 to vector<8x128xf32>
    %216 = arith.mulf %157, %215 : vector<8x128xf32>
    %217 = arith.addf %214, %216 : vector<8x128xf32>
    %218 = vector.broadcast %28 : f32 to vector<8x128xf32>
    %219 = arith.mulf %182, %218 : vector<8x128xf32>
    %220 = arith.addf %217, %219 : vector<8x128xf32>
    %221 = vector.broadcast %29 : f32 to vector<8x128xf32>
    %222 = arith.mulf %207, %221 : vector<8x128xf32>
    %223 = arith.addf %220, %222 : vector<8x128xf32>
    %cst_147 = arith.constant -3.000000e+01 : f32
    %224 = vector.broadcast %cst_147 : f32 to vector<8x128xf32>
    %225 = arith.maximumf %223, %224 : vector<8x128xf32>
    %cst_148 = arith.constant 0.000000e+00 : f32
    %226 = vector.broadcast %cst_148 : f32 to vector<8x128xf32>
    %227 = arith.subf %226, %225 : vector<8x128xf32>
    %228 = math.exp %227 : vector<8x128xf32>
    %cst_149 = arith.constant 1.000000e+00 : f32
    %229 = vector.broadcast %cst_149 : f32 to vector<8x128xf32>
    %230 = arith.addf %229, %228 : vector<8x128xf32>
    %231 = tpu.reciprocal %230 {approx = true} : vector<8x128xf32> -> vector<8x128xf32>
    %232 = arith.mulf %230, %231 : vector<8x128xf32>
    %cst_150 = arith.constant 2.000000e+00 : f32
    %233 = vector.broadcast %cst_150 : f32 to vector<8x128xf32>
    %234 = arith.subf %233, %232 : vector<8x128xf32>
    %235 = arith.mulf %231, %234 : vector<8x128xf32>
    %236 = vector.broadcast %30 : f32 to vector<8x128xf32>
    %237 = arith.mulf %107, %236 : vector<8x128xf32>
    %238 = vector.broadcast %46 : f32 to vector<8x128xf32>
    %239 = arith.addf %237, %238 : vector<8x128xf32>
    %240 = vector.broadcast %31 : f32 to vector<8x128xf32>
    %241 = arith.mulf %132, %240 : vector<8x128xf32>
    %242 = arith.addf %239, %241 : vector<8x128xf32>
    %243 = vector.broadcast %32 : f32 to vector<8x128xf32>
    %244 = arith.mulf %157, %243 : vector<8x128xf32>
    %245 = arith.addf %242, %244 : vector<8x128xf32>
    %246 = vector.broadcast %33 : f32 to vector<8x128xf32>
    %247 = arith.mulf %182, %246 : vector<8x128xf32>
    %248 = arith.addf %245, %247 : vector<8x128xf32>
    %249 = vector.broadcast %34 : f32 to vector<8x128xf32>
    %250 = arith.mulf %207, %249 : vector<8x128xf32>
    %251 = arith.addf %248, %250 : vector<8x128xf32>
    %cst_151 = arith.constant -3.000000e+01 : f32
    %252 = vector.broadcast %cst_151 : f32 to vector<8x128xf32>
    %253 = arith.maximumf %251, %252 : vector<8x128xf32>
    %cst_152 = arith.constant 0.000000e+00 : f32
    %254 = vector.broadcast %cst_152 : f32 to vector<8x128xf32>
    %255 = arith.subf %254, %253 : vector<8x128xf32>
    %256 = math.exp %255 : vector<8x128xf32>
    %cst_153 = arith.constant 1.000000e+00 : f32
    %257 = vector.broadcast %cst_153 : f32 to vector<8x128xf32>
    %258 = arith.addf %257, %256 : vector<8x128xf32>
    %259 = tpu.reciprocal %258 {approx = true} : vector<8x128xf32> -> vector<8x128xf32>
    %260 = arith.mulf %258, %259 : vector<8x128xf32>
    %cst_154 = arith.constant 2.000000e+00 : f32
    %261 = vector.broadcast %cst_154 : f32 to vector<8x128xf32>
    %262 = arith.subf %261, %260 : vector<8x128xf32>
    %263 = arith.mulf %259, %262 : vector<8x128xf32>
    %264 = vector.broadcast %35 : f32 to vector<8x128xf32>
    %265 = arith.mulf %107, %264 : vector<8x128xf32>
    %266 = vector.broadcast %47 : f32 to vector<8x128xf32>
    %267 = arith.addf %265, %266 : vector<8x128xf32>
    %268 = vector.broadcast %36 : f32 to vector<8x128xf32>
    %269 = arith.mulf %132, %268 : vector<8x128xf32>
    %270 = arith.addf %267, %269 : vector<8x128xf32>
    %271 = vector.broadcast %37 : f32 to vector<8x128xf32>
    %272 = arith.mulf %157, %271 : vector<8x128xf32>
    %273 = arith.addf %270, %272 : vector<8x128xf32>
    %274 = vector.broadcast %38 : f32 to vector<8x128xf32>
    %275 = arith.mulf %182, %274 : vector<8x128xf32>
    %276 = arith.addf %273, %275 : vector<8x128xf32>
    %277 = vector.broadcast %39 : f32 to vector<8x128xf32>
    %278 = arith.mulf %207, %277 : vector<8x128xf32>
    %279 = arith.addf %276, %278 : vector<8x128xf32>
    %cst_155 = arith.constant -3.000000e+01 : f32
    %280 = vector.broadcast %cst_155 : f32 to vector<8x128xf32>
    %281 = arith.maximumf %279, %280 : vector<8x128xf32>
    %cst_156 = arith.constant 0.000000e+00 : f32
    %282 = vector.broadcast %cst_156 : f32 to vector<8x128xf32>
    %283 = arith.subf %282, %281 : vector<8x128xf32>
    %284 = math.exp %283 : vector<8x128xf32>
    %cst_157 = arith.constant 1.000000e+00 : f32
    %285 = vector.broadcast %cst_157 : f32 to vector<8x128xf32>
    %286 = arith.addf %285, %284 : vector<8x128xf32>
    %287 = tpu.reciprocal %286 {approx = true} : vector<8x128xf32> -> vector<8x128xf32>
    %288 = arith.mulf %286, %287 : vector<8x128xf32>
    %cst_158 = arith.constant 2.000000e+00 : f32
    %289 = vector.broadcast %cst_158 : f32 to vector<8x128xf32>
    %290 = arith.subf %289, %288 : vector<8x128xf32>
    %291 = arith.mulf %287, %290 : vector<8x128xf32>
    %292 = vector.broadcast %40 : f32 to vector<8x128xf32>
    %293 = arith.mulf %107, %292 : vector<8x128xf32>
    %294 = vector.broadcast %48 : f32 to vector<8x128xf32>
    %295 = arith.addf %293, %294 : vector<8x128xf32>
    %296 = vector.broadcast %41 : f32 to vector<8x128xf32>
    %297 = arith.mulf %132, %296 : vector<8x128xf32>
    %298 = arith.addf %295, %297 : vector<8x128xf32>
    %299 = vector.broadcast %42 : f32 to vector<8x128xf32>
    %300 = arith.mulf %157, %299 : vector<8x128xf32>
    %301 = arith.addf %298, %300 : vector<8x128xf32>
    %302 = vector.broadcast %43 : f32 to vector<8x128xf32>
    %303 = arith.mulf %182, %302 : vector<8x128xf32>
    %304 = arith.addf %301, %303 : vector<8x128xf32>
    %305 = vector.broadcast %44 : f32 to vector<8x128xf32>
    %306 = arith.mulf %207, %305 : vector<8x128xf32>
    %307 = arith.addf %304, %306 : vector<8x128xf32>
    %cst_159 = arith.constant -3.000000e+01 : f32
    %308 = vector.broadcast %cst_159 : f32 to vector<8x128xf32>
    %309 = arith.maximumf %307, %308 : vector<8x128xf32>
    %cst_160 = arith.constant 0.000000e+00 : f32
    %310 = vector.broadcast %cst_160 : f32 to vector<8x128xf32>
    %311 = arith.subf %310, %309 : vector<8x128xf32>
    %312 = math.exp %311 : vector<8x128xf32>
    %cst_161 = arith.constant 1.000000e+00 : f32
    %313 = vector.broadcast %cst_161 : f32 to vector<8x128xf32>
    %314 = arith.addf %313, %312 : vector<8x128xf32>
    %315 = tpu.reciprocal %314 {approx = true} : vector<8x128xf32> -> vector<8x128xf32>
    %316 = arith.mulf %314, %315 : vector<8x128xf32>
    %cst_162 = arith.constant 2.000000e+00 : f32
    %317 = vector.broadcast %cst_162 : f32 to vector<8x128xf32>
    %318 = arith.subf %317, %316 : vector<8x128xf32>
    %319 = arith.mulf %315, %318 : vector<8x128xf32>
    %320 = vector.broadcast %49 : f32 to vector<8x128xf32>
    %321 = arith.mulf %235, %320 : vector<8x128xf32>
    %322 = vector.broadcast %65 : f32 to vector<8x128xf32>
    %323 = arith.addf %321, %322 : vector<8x128xf32>
    %324 = vector.broadcast %50 : f32 to vector<8x128xf32>
    %325 = arith.mulf %263, %324 : vector<8x128xf32>
    %326 = arith.addf %323, %325 : vector<8x128xf32>
    %327 = vector.broadcast %51 : f32 to vector<8x128xf32>
    %328 = arith.mulf %291, %327 : vector<8x128xf32>
    %329 = arith.addf %326, %328 : vector<8x128xf32>
    %330 = vector.broadcast %52 : f32 to vector<8x128xf32>
    %331 = arith.mulf %319, %330 : vector<8x128xf32>
    %332 = arith.addf %329, %331 : vector<8x128xf32>
    %333 = vector.broadcast %53 : f32 to vector<8x128xf32>
    %334 = arith.mulf %235, %333 : vector<8x128xf32>
    %335 = vector.broadcast %66 : f32 to vector<8x128xf32>
    %336 = arith.addf %334, %335 : vector<8x128xf32>
    %337 = vector.broadcast %54 : f32 to vector<8x128xf32>
    %338 = arith.mulf %263, %337 : vector<8x128xf32>
    %339 = arith.addf %336, %338 : vector<8x128xf32>
    %340 = vector.broadcast %55 : f32 to vector<8x128xf32>
    %341 = arith.mulf %291, %340 : vector<8x128xf32>
    %342 = arith.addf %339, %341 : vector<8x128xf32>
    %343 = vector.broadcast %56 : f32 to vector<8x128xf32>
    %344 = arith.mulf %319, %343 : vector<8x128xf32>
    %345 = arith.addf %342, %344 : vector<8x128xf32>
    %346 = vector.broadcast %57 : f32 to vector<8x128xf32>
    %347 = arith.mulf %235, %346 : vector<8x128xf32>
    %348 = vector.broadcast %67 : f32 to vector<8x128xf32>
    %349 = arith.addf %347, %348 : vector<8x128xf32>
    %350 = vector.broadcast %58 : f32 to vector<8x128xf32>
    %351 = arith.mulf %263, %350 : vector<8x128xf32>
    %352 = arith.addf %349, %351 : vector<8x128xf32>
    %353 = vector.broadcast %59 : f32 to vector<8x128xf32>
    %354 = arith.mulf %291, %353 : vector<8x128xf32>
    %355 = arith.addf %352, %354 : vector<8x128xf32>
    %356 = vector.broadcast %60 : f32 to vector<8x128xf32>
    %357 = arith.mulf %319, %356 : vector<8x128xf32>
    %358 = arith.addf %355, %357 : vector<8x128xf32>
    %359 = vector.broadcast %61 : f32 to vector<8x128xf32>
    %360 = arith.mulf %235, %359 : vector<8x128xf32>
    %361 = vector.broadcast %68 : f32 to vector<8x128xf32>
    %362 = arith.addf %360, %361 : vector<8x128xf32>
    %363 = vector.broadcast %62 : f32 to vector<8x128xf32>
    %364 = arith.mulf %263, %363 : vector<8x128xf32>
    %365 = arith.addf %362, %364 : vector<8x128xf32>
    %366 = vector.broadcast %63 : f32 to vector<8x128xf32>
    %367 = arith.mulf %291, %366 : vector<8x128xf32>
    %368 = arith.addf %365, %367 : vector<8x128xf32>
    %369 = vector.broadcast %64 : f32 to vector<8x128xf32>
    %370 = arith.mulf %319, %369 : vector<8x128xf32>
    %371 = arith.addf %368, %370 : vector<8x128xf32>
    %c0_163 = arith.constant 0 : index
    %372 = arith.index_cast %70 : i32 to index
    %c0_164 = arith.constant 0 : index
    %373 = vector.load %arg8[%c0_163, %372, %c0_164] : memref<4x8x128xf32, #tpu.memory_space<vmem>>, vector<1x8x128xf32>
    %374 = vector.shape_cast %373 : vector<1x8x128xf32> to vector<8x128xf32>
    %375 = vector.shape_cast %332 : vector<8x128xf32> to vector<1x8x128xf32>
    tpu.vector_store %arg8[%c0_163, %372, %c0_164], %375 {strides = array<i32>} : memref<4x8x128xf32, #tpu.memory_space<vmem>>, vector<1x8x128xf32>,
    %c1_165 = arith.constant 1 : index
    %376 = arith.index_cast %70 : i32 to index
    %c0_166 = arith.constant 0 : index
    %377 = vector.load %arg8[%c1_165, %376, %c0_166] : memref<4x8x128xf32, #tpu.memory_space<vmem>>, vector<1x8x128xf32>
    %378 = vector.shape_cast %377 : vector<1x8x128xf32> to vector<8x128xf32>
    %379 = vector.shape_cast %345 : vector<8x128xf32> to vector<1x8x128xf32>
    tpu.vector_store %arg8[%c1_165, %376, %c0_166], %379 {strides = array<i32>} : memref<4x8x128xf32, #tpu.memory_space<vmem>>, vector<1x8x128xf32>,
    %c2_167 = arith.constant 2 : index
    %380 = arith.index_cast %70 : i32 to index
    %c0_168 = arith.constant 0 : index
    %381 = vector.load %arg8[%c2_167, %380, %c0_168] : memref<4x8x128xf32, #tpu.memory_space<vmem>>, vector<1x8x128xf32>
    %382 = vector.shape_cast %381 : vector<1x8x128xf32> to vector<8x128xf32>
    %383 = vector.shape_cast %358 : vector<8x128xf32> to vector<1x8x128xf32>
    tpu.vector_store %arg8[%c2_167, %380, %c0_168], %383 {strides = array<i32>} : memref<4x8x128xf32, #tpu.memory_space<vmem>>, vector<1x8x128xf32>,
    %c3_169 = arith.constant 3 : index
    %384 = arith.index_cast %70 : i32 to index
    %c0_170 = arith.constant 0 : index
    %385 = vector.load %arg8[%c3_169, %384, %c0_170] : memref<4x8x128xf32, #tpu.memory_space<vmem>>, vector<1x8x128xf32>
    %386 = vector.shape_cast %385 : vector<1x8x128xf32> to vector<8x128xf32>
    %387 = vector.shape_cast %371 : vector<8x128xf32> to vector<1x8x128xf32>
    tpu.vector_store %arg8[%c3_169, %384, %c0_170], %387 {strides = array<i32>} : memref<4x8x128xf32, #tpu.memory_space<vmem>>, vector<1x8x128xf32>,
    %c1_i32 = arith.constant 1 : i32
    return
  }
  func.func @transform_0(%arg0: i32) -> (i32, i32, i32) {
    %c0_i32 = arith.constant 0 : i32
    %c0_i32_0 = arith.constant 0 : i32
    %c0_i32_1 = arith.constant 0 : i32
    return %c0_i32, %arg0, %c0_i32_0 : i32, i32, i32
  }
  func.func @transform_1(%arg0: i32) -> (i32, i32) {
    %c0_i32 = arith.constant 0 : i32
    %c0_i32_0 = arith.constant 0 : i32
    %c0_i32_1 = arith.constant 0 : i32
    return %c0_i32, %c0_i32_0 : i32, i32
  }
  func.func @transform_2(%arg0: i32) -> i32 {
    %c0_i32 = arith.constant 0 : i32
    %c0_i32_0 = arith.constant 0 : i32
    return %c0_i32 : i32
  }
  func.func @transform_3(%arg0: i32) -> (i32, i32) {
    %c0_i32 = arith.constant 0 : i32
    %c0_i32_0 = arith.constant 0 : i32
    %c0_i32_1 = arith.constant 0 : i32
    return %c0_i32, %c0_i32_0 : i32, i32
  }
  func.func @transform_4(%arg0: i32) -> i32 {
    %c0_i32 = arith.constant 0 : i32
    %c0_i32_0 = arith.constant 0 : i32
    return %c0_i32 : i32
  }
  func.func @transform_5(%arg0: i32) -> (i32, i32) {
    %c0_i32 = arith.constant 0 : i32
    %c0_i32_0 = arith.constant 0 : i32
    %c0_i32_1 = arith.constant 0 : i32
    return %c0_i32, %c0_i32_0 : i32, i32
  }
  func.func @transform_6(%arg0: i32) -> i32 {
    %c0_i32 = arith.constant 0 : i32
    %c0_i32_0 = arith.constant 0 : i32
    return %c0_i32 : i32
  }
  func.func @transform_7(%arg0: i32) -> (i32, i32, i32) {
    %c0_i32 = arith.constant 0 : i32
    %c0_i32_0 = arith.constant 0 : i32
    %c0_i32_1 = arith.constant 0 : i32
    return %c0_i32, %arg0, %c0_i32_0 : i32, i32, i32
  }
}

</mosaic_0001>

<llo_original>
// kernel: tpu_custom_call.1
$region0: #{tpu_custom_call.1}
  #allocation0 [shape = 'u32[]', space=smem, size = 0x4, offset = 0x4, fixed_abs, tag = 'smem constant byte address 0x4 - core index']
  #allocation1 [shape = 'u32[144,128]{1,0:T(1,128)}', space=vmem, size = 0x12000, scoped, tag = 'internal scratch']
  %s0 = inlined_call_operand.hbm [shape: f32[4,8,128], index: 0, kind: input, shape index: {}]
  %s1 = inlined_call_operand.vmem [shape: f32[5,4], index: 1, kind: input, shape index: {}]
  %s2 = inlined_call_operand.vmem [shape: f32[5], index: 2, kind: input, shape index: {}]
  %s3 = inlined_call_operand.vmem [shape: f32[4,5], index: 3, kind: input, shape index: {}]
  %s4 = inlined_call_operand.vmem [shape: f32[4], index: 4, kind: input, shape index: {}]
  %s5 = inlined_call_operand.vmem [shape: f32[4,4], index: 5, kind: input, shape index: {}]
  %s6 = inlined_call_operand.vmem [shape: f32[4], index: 6, kind: input, shape index: {}]
  %s7 = inlined_call_operand.hbm [shape: f32[4,8,128], index: 7, kind: output, shape index: {}]
  %s8 = sld [smem:[#allocation0]]
  $region66: #{tpu_custom_call.1} parent=0
    _
  %s10 = ssub.s32 1, %s8
  %s11 = scalar_select 0, %s10, %s8
  $region1: #{tpu_custom_call.1} parent=0
    #allocation2 [shape = 'u8[16384]{0}', space=vmem, size = 0x4000, scoped, tag = 'input window, operand 0, single buffered']
    #allocation3 [shape = 's32[1]{0}', space=sflag, size = 0x4, scoped, tag = 'scoped memory for tpu_custom_call.1']
    #allocation4 [shape = 's32[1]{0}', space=sflag, size = 0x4, scoped, tag = 'scoped memory for tpu_custom_call.1']
    #allocation5 [shape = 's32[1]{0}', space=sflag, size = 0x4, scoped, tag = 'scoped memory for tpu_custom_call.1']
    #allocation6 [shape = 'u8[4096]{0}', space=smem, size = 0x1000, scoped, tag = 'input window, operand 1, single buffered']
    #allocation7 [shape = 'u8[512]{0}', space=smem, size = 0x200, scoped, tag = 'input window, operand 2, single buffered']
    #allocation8 [shape = 's32[1]{0}', space=sflag, size = 0x4, scoped, tag = 'scoped memory for tpu_custom_call.1']
    #allocation9 [shape = 'u8[2048]{0}', space=smem, size = 0x800, scoped, tag = 'input window, operand 3, single buffered']
    #allocation10 [shape = 'u8[512]{0}', space=smem, size = 0x200, scoped, tag = 'input window, operand 4, single buffered']
    #allocation11 [shape = 's32[1]{0}', space=sflag, size = 0x4, scoped, tag = 'scoped memory for tpu_custom_call.1']
    #allocation12 [shape = 'u8[2048]{0}', space=smem, size = 0x800, scoped, tag = 'input window, operand 5, single buffered']
    #allocation13 [shape = 'u8[512]{0}', space=smem, size = 0x200, scoped, tag = 'input window, operand 6, single buffered']
    #allocation14 [shape = 's32[1]{0}', space=sflag, size = 0x4, scoped, tag = 'scoped memory for tpu_custom_call.1']
    #allocation15 [shape = 'u8[16384]{0}', space=vmem, size = 0x4000, scoped, tag = 'output window, operand 0, single buffered']
    %12 = vsyncpa [#allocation3], 0
    %13 = vsyncpa [#allocation5], 0
    %14 = vsyncpa [#allocation8], 0
    %15 = vsyncpa [#allocation11], 0
    %16 = vsyncpa [#allocation14], 0
    %17 = vsyncpa [#allocation4], 0
    // Predicated region
    $region2: #{tpu_custom_call.1} parent=1 // pred_check
      _
    $region3: #{tpu_custom_call.1} parent=1 // pred_check_branch
      %19 = sbr.rel (0) target = $region5
    $region4: #{tpu_custom_call.1} parent=1 // pred_region
      %s21 = ssub.s32 512, 512
      %22 = vsyncadd [#allocation3], %s21
      %s23 = sshll.u32 [#allocation2], 4
      %s24 = int_to_ptr.vmem [resolvable:$true] %s23
      %29 = dma.hbm_to_vmem [thread:$0]  %s0, 512, %s24, [#allocation3], 128, 128, 8
    $region5: #{tpu_custom_call.1} parent=1 // pred_fallthru
      _
    // Predicated region
    $region6: #{tpu_custom_call.1} parent=1 // pred_check
      _
    $region7: #{tpu_custom_call.1} parent=1 // pred_check_branch
      %31 = sbr.rel (0) target = $region9
    $region8: #{tpu_custom_call.1} parent=1 // pred_region
      %s33 = ssub.s32 128, 128
      %34 = vsyncadd [#allocation5], %s33
      %s36 = sshll.u32 %s1, 4
      %s37 = int_to_ptr.vmem [resolvable:$true] %s36
      %39 = dma.vmem_to_smem %s37, 128, [#allocation6], [#allocation5]
    $region9: #{tpu_custom_call.1} parent=1 // pred_fallthru
      _
    // Predicated region
    $region10: #{tpu_custom_call.1} parent=1 // pred_check
      _
    $region11: #{tpu_custom_call.1} parent=1 // pred_check_branch
      %41 = sbr.rel (0) target = $region13
    $region12: #{tpu_custom_call.1} parent=1 // pred_region
      %s43 = ssub.s32 16, 16
      %44 = vsyncadd [#allocation8], %s43
      %s46 = sshll.u32 %s2, 4
      %s47 = int_to_ptr.vmem [resolvable:$true] %s46
      %49 = dma.vmem_to_smem %s47, 16, [#allocation7], [#allocation8]
    $region13: #{tpu_custom_call.1} parent=1 // pred_fallthru
      _
    // Predicated region
    $region14: #{tpu_custom_call.1} parent=1 // pred_check
      _
    $region15: #{tpu_custom_call.1} parent=1 // pred_check_branch
      %51 = sbr.rel (0) target = $region17
    $region16: #{tpu_custom_call.1} parent=1 // pred_region
      %s53 = ssub.s32 64, 64
      %54 = vsyncadd [#allocation8], %s53
      %s56 = sshll.u32 %s3, 4
      %s57 = int_to_ptr.vmem [resolvable:$true] %s56
      %59 = dma.vmem_to_smem %s57, 64, [#allocation9], [#allocation8]
    $region17: #{tpu_custom_call.1} parent=1 // pred_fallthru
      _
    // Predicated region
    $region18: #{tpu_custom_call.1} parent=1 // pred_check
      _
    $region19: #{tpu_custom_call.1} parent=1 // pred_check_branch
      %61 = sbr.rel (0) target = $region21
    $region20: #{tpu_custom_call.1} parent=1 // pred_region
      %s63 = ssub.s32 16, 16
      %64 = vsyncadd [#allocation11], %s63
      %s66 = sshll.u32 %s4, 4
      %s67 = int_to_ptr.vmem [resolvable:$true] %s66
      %69 = dma.vmem_to_smem %s67, 16, [#allocation10], [#allocation11]
    $region21: #{tpu_custom_call.1} parent=1 // pred_fallthru
      _
    // Predicated region
    $region22: #{tpu_custom_call.1} parent=1 // pred_check
      _
    $region23: #{tpu_custom_call.1} parent=1 // pred_check_branch
      %71 = sbr.rel (0) target = $region25
    $region24: #{tpu_custom_call.1} parent=1 // pred_region
      %s73 = ssub.s32 64, 64
      %74 = vsyncadd [#allocation11], %s73
      %s76 = sshll.u32 %s5, 4
      %s77 = int_to_ptr.vmem [resolvable:$true] %s76
      %79 = dma.vmem_to_smem %s77, 64, [#allocation12], [#allocation11]
    $region25: #{tpu_custom_call.1} parent=1 // pred_fallthru
      _
    // Predicated region
    $region26: #{tpu_custom_call.1} parent=1 // pred_check
      _
    $region27: #{tpu_custom_call.1} parent=1 // pred_check_branch
      %81 = sbr.rel (0) target = $region29
    $region28: #{tpu_custom_call.1} parent=1 // pred_region
      %s83 = ssub.s32 16, 16
      %84 = vsyncadd [#allocation14], %s83
      %s86 = sshll.u32 %s6, 4
      %s87 = int_to_ptr.vmem [resolvable:$true] %s86
      %89 = dma.vmem_to_smem %s87, 16, [#allocation13], [#allocation14]
    $region29: #{tpu_custom_call.1} parent=1 // pred_fallthru
      _
    // Predicated region
    $region30: #{tpu_custom_call.1} parent=1 // pred_check
      _
    $region31: #{tpu_custom_call.1} parent=1 // pred_check_branch
      %91 = sbr.rel (0) target = $region33
    $region32: #{tpu_custom_call.1} parent=1 // pred_region
      %92 = dma.done [#allocation3], 512
    $region33: #{tpu_custom_call.1} parent=1 // pred_fallthru
      _
    // Predicated region
    $region34: #{tpu_custom_call.1} parent=1 // pred_check
      _
    $region35: #{tpu_custom_call.1} parent=1 // pred_check_branch
      %94 = sbr.rel (0) target = $region37
    $region36: #{tpu_custom_call.1} parent=1 // pred_region
      %95 = dma.done [#allocation5], 128
    $region37: #{tpu_custom_call.1} parent=1 // pred_fallthru
      _
    // Predicated region
    $region38: #{tpu_custom_call.1} parent=1 // pred_check
      _
    $region39: #{tpu_custom_call.1} parent=1 // pred_check_branch
      %97 = sbr.rel (0) target = $region41
    $region40: #{tpu_custom_call.1} parent=1 // pred_region
      %98 = dma.done [#allocation8], 16
    $region41: #{tpu_custom_call.1} parent=1 // pred_fallthru
      _
    // Predicated region
    $region42: #{tpu_custom_call.1} parent=1 // pred_check
      _
    $region43: #{tpu_custom_call.1} parent=1 // pred_check_branch
      %100 = sbr.rel (0) target = $region45
    $region44: #{tpu_custom_call.1} parent=1 // pred_region
      %101 = dma.done [#allocation8], 64
    $region45: #{tpu_custom_call.1} parent=1 // pred_fallthru
      _
    // Predicated region
    $region46: #{tpu_custom_call.1} parent=1 // pred_check
      _
    $region47: #{tpu_custom_call.1} parent=1 // pred_check_branch
      %103 = sbr.rel (0) target = $region49
    $region48: #{tpu_custom_call.1} parent=1 // pred_region
      %104 = dma.done [#allocation11], 16
    $region49: #{tpu_custom_call.1} parent=1 // pred_fallthru
      _
    // Predicated region
    $region50: #{tpu_custom_call.1} parent=1 // pred_check
      _
    $region51: #{tpu_custom_call.1} parent=1 // pred_check_branch
      %106 = sbr.rel (0) target = $region53
    $region52: #{tpu_custom_call.1} parent=1 // pred_region
      %107 = dma.done [#allocation11], 64
    $region53: #{tpu_custom_call.1} parent=1 // pred_fallthru
      _
    // Predicated region
    $region54: #{tpu_custom_call.1} parent=1 // pred_check
      _
    $region55: #{tpu_custom_call.1} parent=1 // pred_check_branch
      %109 = sbr.rel (0) target = $region57
    $region56: #{tpu_custom_call.1} parent=1 // pred_region
      %110 = dma.done [#allocation14], 16
    $region57: #{tpu_custom_call.1} parent=1 // pred_fallthru
      _
    %111 = sfence
    %s112 = sld [smem:[#allocation6]]
    %s113 = sld [smem:[#allocation6 + $0x1]]
    %s114 = sld [smem:[#allocation6 + $0x2]]
    %s115 = sld [smem:[#allocation6 + $0x3]]
    %s116 = sld [smem:[#allocation6 + $0x80]]
    %s117 = sld [smem:[#allocation6 + $0x81]]
    %s118 = sld [smem:[#allocation6 + $0x82]]
    %s119 = sld [smem:[#allocation6 + $0x83]]
    %s120 = sld [smem:[#allocation6 + $0x100]]
    %s121 = sld [smem:[#allocation6 + $0x101]]
    %s122 = sld [smem:[#allocation6 + $0x102]]
    %s123 = sld [smem:[#allocation6 + $0x103]]
    %s124 = sld [smem:[#allocation6 + $0x180]]
    %s125 = sld [smem:[#allocation6 + $0x181]]
    %s126 = sld [smem:[#allocation6 + $0x182]]
    %s127 = sld [smem:[#allocation6 + $0x183]]
    %s128 = sld [smem:[#allocation6 + $0x200]]
    %s129 = sld [smem:[#allocation6 + $0x201]]
    %s130 = sld [smem:[#allocation6 + $0x202]]
    %s131 = sld [smem:[#allocation6 + $0x203]]
    %s132 = sld [smem:[#allocation7]]
    %s133 = sld [smem:[#allocation7 + $0x1]]
    %s134 = sld [smem:[#allocation7 + $0x2]]
    %s135 = sld [smem:[#allocation7 + $0x3]]
    %s136 = sld [smem:[#allocation7 + $0x4]]
    %s137 = sld [smem:[#allocation9]]
    %s138 = sld [smem:[#allocation9 + $0x1]]
    %s139 = sld [smem:[#allocation9 + $0x2]]
    %s140 = sld [smem:[#allocation9 + $0x3]]
    %s141 = sld [smem:[#allocation9 + $0x4]]
    %s142 = sld [smem:[#allocation9 + $0x80]]
    %s143 = sld [smem:[#allocation9 + $0x81]]
    %s144 = sld [smem:[#allocation9 + $0x82]]
    %s145 = sld [smem:[#allocation9 + $0x83]]
    %s146 = sld [smem:[#allocation9 + $0x84]]
    %s147 = sld [smem:[#allocation9 + $0x100]]
    %s148 = sld [smem:[#allocation9 + $0x101]]
    %s149 = sld [smem:[#allocation9 + $0x102]]
    %s150 = sld [smem:[#allocation9 + $0x103]]
    %s151 = sld [smem:[#allocation9 + $0x104]]
    %s152 = sld [smem:[#allocation9 + $0x180]]
    %s153 = sld [smem:[#allocation9 + $0x181]]
    %s154 = sld [smem:[#allocation9 + $0x182]]
    %s155 = sld [smem:[#allocation9 + $0x183]]
    %s156 = sld [smem:[#allocation9 + $0x184]]
    %s157 = sld [smem:[#allocation10]]
    %s158 = sld [smem:[#allocation10 + $0x1]]
    %s159 = sld [smem:[#allocation10 + $0x2]]
    %s160 = sld [smem:[#allocation10 + $0x3]]
    %s161 = sld [smem:[#allocation12]]
    %s162 = sld [smem:[#allocation12 + $0x1]]
    %s163 = sld [smem:[#allocation12 + $0x2]]
    %s164 = sld [smem:[#allocation12 + $0x3]]
    %s165 = sld [smem:[#allocation12 + $0x80]]
    %s166 = sld [smem:[#allocation12 + $0x81]]
    %s167 = sld [smem:[#allocation12 + $0x82]]
    %s168 = sld [smem:[#allocation12 + $0x83]]
    %s169 = sld [smem:[#allocation12 + $0x100]]
    %s170 = sld [smem:[#allocation12 + $0x101]]
    %s171 = sld [smem:[#allocation12 + $0x102]]
    %s172 = sld [smem:[#allocation12 + $0x103]]
    %s173 = sld [smem:[#allocation12 + $0x180]]
    %s174 = sld [smem:[#allocation12 + $0x181]]
    %s175 = sld [smem:[#allocation12 + $0x182]]
    %s176 = sld [smem:[#allocation12 + $0x183]]
    %s177 = sld [smem:[#allocation13]]
    %s178 = sld [smem:[#allocation13 + $0x1]]
    %s179 = sld [smem:[#allocation13 + $0x2]]
    %s180 = sld [smem:[#allocation13 + $0x3]]
    %v181 = vld [vmem:[#allocation2] sm:$0xff]
    %s182 = sadd.s32 0, 8
    %s183 = scalar_lea.vmem [#allocation2], %s182
    %v184 = vld [vmem:[%s183] sm:$0xff]
    %s185 = sadd.s32 0, 16
    %s186 = scalar_lea.vmem [#allocation2], %s185
    %v187 = vld [vmem:[%s186] sm:$0xff]
    %s188 = sadd.s32 0, 24
    %s189 = scalar_lea.vmem [#allocation2], %s188
    %v190 = vld [vmem:[%s189] sm:$0xff]
    %v191 = vstv %s112
    %v192 = vmul.f32 %v181, %v191
    %v193 = vstv %s132
    %v194 = vadd.f32 %v192, %v193
    %v195 = vstv %s113
    %v196 = vmul.f32 %v184, %v195
    %v197 = vadd.f32 %v194, %v196
    %v198 = vstv %s114
    %v199 = vmul.f32 %v187, %v198
    %v200 = vadd.f32 %v197, %v199
    %v201 = vstv %s115
    %v202 = vmul.f32 %v190, %v201
    %v203 = vadd.f32 %v200, %v202
    %v204 = vmax.f32 %v203, -30.0
    %v205 = vsub.f32 0.0, %v204
    %v206 = vmul.f32 %v205, 1.442695
    %v207 = vpow.pop %v206
    %v208 = vadd.f32 %v207, 1.0
    %v209 = vrcp.pop %v208
    %v210 = vmul.f32 %v208, %v209
    %v211 = vsub.f32 2.0, %v210
    %v212 = vmul.f32 %v209, %v211
    %v213 = vstv %s116
    %v214 = vmul.f32 %v181, %v213
    %v215 = vstv %s133
    %v216 = vadd.f32 %v214, %v215
    %v217 = vstv %s117
    %v218 = vmul.f32 %v184, %v217
    %v219 = vadd.f32 %v216, %v218
    %v220 = vstv %s118
    %v221 = vmul.f32 %v187, %v220
    %v222 = vadd.f32 %v219, %v221
    %v223 = vstv %s119
    %v224 = vmul.f32 %v190, %v223
    %v225 = vadd.f32 %v222, %v224
    %v226 = vmax.f32 %v225, -30.0
    %v227 = vsub.f32 0.0, %v226
    %v228 = vmul.f32 %v227, 1.442695
    %v229 = vpow.pop %v228
    %v230 = vadd.f32 %v229, 1.0
    %v231 = vrcp.pop %v230
    %v232 = vmul.f32 %v230, %v231
    %v233 = vsub.f32 2.0, %v232
    %v234 = vmul.f32 %v231, %v233
    %v235 = vstv %s120
    %v236 = vmul.f32 %v181, %v235
    %v237 = vstv %s134
    %v238 = vadd.f32 %v236, %v237
    %v239 = vstv %s121
    %v240 = vmul.f32 %v184, %v239
    %v241 = vadd.f32 %v238, %v240
    %v242 = vstv %s122
    %v243 = vmul.f32 %v187, %v242
    %v244 = vadd.f32 %v241, %v243
    %v245 = vstv %s123
    %v246 = vmul.f32 %v190, %v245
    %v247 = vadd.f32 %v244, %v246
    %v248 = vmax.f32 %v247, -30.0
    %v249 = vsub.f32 0.0, %v248
    %v250 = vmul.f32 %v249, 1.442695
    %v251 = vpow.pop %v250
    %v252 = vadd.f32 %v251, 1.0
    %v253 = vrcp.pop %v252
    %v254 = vmul.f32 %v252, %v253
    %v255 = vsub.f32 2.0, %v254
    %v256 = vmul.f32 %v253, %v255
    %v257 = vstv %s124
    %v258 = vmul.f32 %v181, %v257
    %v259 = vstv %s135
    %v260 = vadd.f32 %v258, %v259
    %v261 = vstv %s125
    %v262 = vmul.f32 %v184, %v261
    %v263 = vadd.f32 %v260, %v262
    %v264 = vstv %s126
    %v265 = vmul.f32 %v187, %v264
    %v266 = vadd.f32 %v263, %v265
    %v267 = vstv %s127
    %v268 = vmul.f32 %v190, %v267
    %v269 = vadd.f32 %v266, %v268
    %v270 = vmax.f32 %v269, -30.0
    %v271 = vsub.f32 0.0, %v270
    %v272 = vmul.f32 %v271, 1.442695
    %v273 = vpow.pop %v272
    %v274 = vadd.f32 %v273, 1.0
    %v275 = vrcp.pop %v274
    %v276 = vmul.f32 %v274, %v275
    %v277 = vsub.f32 2.0, %v276
    %v278 = vmul.f32 %v275, %v277
    %v279 = vstv %s128
    %v280 = vmul.f32 %v181, %v279
    %v281 = vstv %s136
    %v282 = vadd.f32 %v280, %v281
    %v283 = vstv %s129
    %v284 = vmul.f32 %v184, %v283
    %v285 = vadd.f32 %v282, %v284
    %v286 = vstv %s130
    %v287 = vmul.f32 %v187, %v286
    %v288 = vadd.f32 %v285, %v287
    %v289 = vstv %s131
    %v290 = vmul.f32 %v190, %v289
    %v291 = vadd.f32 %v288, %v290
    %v292 = vmax.f32 %v291, -30.0
    %v293 = vsub.f32 0.0, %v292
    %v294 = vmul.f32 %v293, 1.442695
    %v295 = vpow.pop %v294
    %v296 = vadd.f32 %v295, 1.0
    %v297 = vrcp.pop %v296
    %v298 = vmul.f32 %v296, %v297
    %v299 = vsub.f32 2.0, %v298
    %v300 = vmul.f32 %v297, %v299
    %v301 = vstv %s137
    %v302 = vmul.f32 %v212, %v301
    %v303 = vstv %s157
    %v304 = vadd.f32 %v302, %v303
    %v305 = vstv %s138
    %v306 = vmul.f32 %v234, %v305
    %v307 = vadd.f32 %v304, %v306
    %v308 = vstv %s139
    %v309 = vmul.f32 %v256, %v308
    %v310 = vadd.f32 %v307, %v309
    %v311 = vstv %s140
    %v312 = vmul.f32 %v278, %v311
    %v313 = vadd.f32 %v310, %v312
    %v314 = vstv %s141
    %v315 = vmul.f32 %v300, %v314
    %v316 = vadd.f32 %v313, %v315
    %v317 = vmax.f32 %v316, -30.0
    %v318 = vsub.f32 0.0, %v317
    %v319 = vmul.f32 %v318, 1.442695
    %v320 = vpow.pop %v319
    %v321 = vadd.f32 %v320, 1.0
    %v322 = vrcp.pop %v321
    %v323 = vmul.f32 %v321, %v322
    %v324 = vsub.f32 2.0, %v323
    %v325 = vmul.f32 %v322, %v324
    %v326 = vstv %s142
    %v327 = vmul.f32 %v212, %v326
    %v328 = vstv %s158
    %v329 = vadd.f32 %v327, %v328
    %v330 = vstv %s143
    %v331 = vmul.f32 %v234, %v330
    %v332 = vadd.f32 %v329, %v331
    %v333 = vstv %s144
    %v334 = vmul.f32 %v256, %v333
    %v335 = vadd.f32 %v332, %v334
    %v336 = vstv %s145
    %v337 = vmul.f32 %v278, %v336
    %v338 = vadd.f32 %v335, %v337
    %v339 = vstv %s146
    %v340 = vmul.f32 %v300, %v339
    %v341 = vadd.f32 %v338, %v340
    %v342 = vmax.f32 %v341, -30.0
    %v343 = vsub.f32 0.0, %v342
    %v344 = vmul.f32 %v343, 1.442695
    %v345 = vpow.pop %v344
    %v346 = vadd.f32 %v345, 1.0
    %v347 = vrcp.pop %v346
    %v348 = vmul.f32 %v346, %v347
    %v349 = vsub.f32 2.0, %v348
    %v350 = vmul.f32 %v347, %v349
    %v351 = vstv %s147
    %v352 = vmul.f32 %v212, %v351
    %v353 = vstv %s159
    %v354 = vadd.f32 %v352, %v353
    %v355 = vstv %s148
    %v356 = vmul.f32 %v234, %v355
    %v357 = vadd.f32 %v354, %v356
    %v358 = vstv %s149
    %v359 = vmul.f32 %v256, %v358
    %v360 = vadd.f32 %v357, %v359
    %v361 = vstv %s150
    %v362 = vmul.f32 %v278, %v361
    %v363 = vadd.f32 %v360, %v362
    %v364 = vstv %s151
    %v365 = vmul.f32 %v300, %v364
    %v366 = vadd.f32 %v363, %v365
    %v367 = vmax.f32 %v366, -30.0
    %v368 = vsub.f32 0.0, %v367
    %v369 = vmul.f32 %v368, 1.442695
    %v370 = vpow.pop %v369
    %v371 = vadd.f32 %v370, 1.0
    %v372 = vrcp.pop %v371
    %v373 = vmul.f32 %v371, %v372
    %v374 = vsub.f32 2.0, %v373
    %v375 = vmul.f32 %v372, %v374
    %v376 = vstv %s152
    %v377 = vmul.f32 %v212, %v376
    %v378 = vstv %s160
    %v379 = vadd.f32 %v377, %v378
    %v380 = vstv %s153
    %v381 = vmul.f32 %v234, %v380
    %v382 = vadd.f32 %v379, %v381
    %v383 = vstv %s154
    %v384 = vmul.f32 %v256, %v383
    %v385 = vadd.f32 %v382, %v384
    %v386 = vstv %s155
    %v387 = vmul.f32 %v278, %v386
    %v388 = vadd.f32 %v385, %v387
    %v389 = vstv %s156
    %v390 = vmul.f32 %v300, %v389
    %v391 = vadd.f32 %v388, %v390
    %v392 = vmax.f32 %v391, -30.0
    %v393 = vsub.f32 0.0, %v392
    %v394 = vmul.f32 %v393, 1.442695
    %v395 = vpow.pop %v394
    %v396 = vadd.f32 %v395, 1.0
    %v397 = vrcp.pop %v396
    %v398 = vmul.f32 %v396, %v397
    %v399 = vsub.f32 2.0, %v398
    %v400 = vmul.f32 %v397, %v399
    %v401 = vstv %s161
    %v402 = vmul.f32 %v325, %v401
    %v403 = vstv %s177
    %v404 = vadd.f32 %v402, %v403
    %v405 = vstv %s162
    %v406 = vmul.f32 %v350, %v405
    %v407 = vadd.f32 %v404, %v406
    %v408 = vstv %s163
    %v409 = vmul.f32 %v375, %v408
    %v410 = vadd.f32 %v407, %v409
    %v411 = vstv %s164
    %v412 = vmul.f32 %v400, %v411
    %v413 = vadd.f32 %v410, %v412
    %v414 = vstv %s165
    %v415 = vmul.f32 %v325, %v414
    %v416 = vstv %s178
    %v417 = vadd.f32 %v415, %v416
    %v418 = vstv %s166
    %v419 = vmul.f32 %v350, %v418
    %v420 = vadd.f32 %v417, %v419
    %v421 = vstv %s167
    %v422 = vmul.f32 %v375, %v421
    %v423 = vadd.f32 %v420, %v422
    %v424 = vstv %s168
    %v425 = vmul.f32 %v400, %v424
    %v426 = vadd.f32 %v423, %v425
    %v427 = vstv %s169
    %v428 = vmul.f32 %v325, %v427
    %v429 = vstv %s179
    %v430 = vadd.f32 %v428, %v429
    %v431 = vstv %s170
    %v432 = vmul.f32 %v350, %v431
    %v433 = vadd.f32 %v430, %v432
    %v434 = vstv %s171
    %v435 = vmul.f32 %v375, %v434
    %v436 = vadd.f32 %v433, %v435
    %v437 = vstv %s172
    %v438 = vmul.f32 %v400, %v437
    %v439 = vadd.f32 %v436, %v438
    %v440 = vstv %s173
    %v441 = vmul.f32 %v325, %v440
    %v442 = vstv %s180
    %v443 = vadd.f32 %v441, %v442
    %v444 = vstv %s174
    %v445 = vmul.f32 %v350, %v444
    %v446 = vadd.f32 %v443, %v445
    %v447 = vstv %s175
    %v448 = vmul.f32 %v375, %v447
    %v449 = vadd.f32 %v446, %v448
    %v450 = vstv %s176
    %v451 = vmul.f32 %v400, %v450
    %v452 = vadd.f32 %v449, %v451
    %453 = vst [vmem:[#allocation15] sm:$0xff] %v413
    %s454 = scalar_lea.vmem [#allocation15], %s182
    %455 = vst [vmem:[%s454] sm:$0xff] %v426
    %s456 = scalar_lea.vmem [#allocation15], %s185
    %457 = vst [vmem:[%s456] sm:$0xff] %v439
    %s458 = scalar_lea.vmem [#allocation15], %s188
    %459 = vst [vmem:[%s458] sm:$0xff] %v452
    // Predicated region
    $region58: #{tpu_custom_call.1} parent=1 // pred_check
      _
    $region59: #{tpu_custom_call.1} parent=1 // pred_check_branch
      %461 = sbr.rel (0) target = $region61
    $region60: #{tpu_custom_call.1} parent=1 // pred_region
      %s463 = ssub.s32 512, 512
      %464 = vsyncadd [#allocation4], %s463
      %s465 = sshll.u32 [#allocation15], 4
      %s466 = int_to_ptr.vmem [resolvable:$true] %s465
      %471 = dma.vmem_to_hbm [thread:$0]  %s466, 512, %s7, [#allocation4], 128, 128, 8
    $region61: #{tpu_custom_call.1} parent=1 // pred_fallthru
      _
    // Predicated region
    $region62: #{tpu_custom_call.1} parent=1 // pred_check
      _
    $region63: #{tpu_custom_call.1} parent=1 // pred_check_branch
      %473 = sbr.rel (0) target = $region65
    $region64: #{tpu_custom_call.1} parent=1 // pred_region
      %474 = dma.done [#allocation4], 512
    $region65: #{tpu_custom_call.1} parent=1 // pred_fallthru
      _
    %475 = vsyncpa [#allocation3], 1
    %476 = vsyncpa [#allocation4], 1
    %477 = vsyncpa [#allocation5], 1
    %478 = vsyncpa [#allocation8], 1
    %479 = vsyncpa [#allocation11], 1
    %480 = vsyncpa [#allocation14], 1

</llo_original>
